<compile_context>
chip_gen: v5e
topology: v5e:2x2
jax: 0.10.0
libtpu: 0.0.40
codegen_flags: <defaults>
</compile_context>

<pallas_src>
import functools

import jax
import jax.numpy as jnp
from jax.experimental import pallas as pl
from jax.experimental.pallas import tpu as pltpu

_LANE = 128


def _gate(w, mask_type):
    return jnp.tanh(w) if mask_type == "tanh" else jax.nn.sigmoid(w)


def _discrete_gate_kernel(w_ref, m_ref, x_ref, o_ref, *, mask_type):
    # w_ref, m_ref : (1, L)  per-feature parameters (resident across steps)
    # x_ref, o_ref : (TB, L) activation block
    w = w_ref[...].astype(jnp.float32)
    gate = _gate(w, mask_type)                                  # EUP
    # Cast the tiny (1, L) coefficient once; the (TB, L) broadcast multiply
    # and the store then run in the activation dtype (VPU).
    coeff = (m_ref[...].astype(jnp.float32) * gate).astype(x_ref.dtype)
    o_ref[...] = coeff * x_ref[...]


def discrete_gate_forward(x, weight, mask, *, mask_type="tanh",
                          min_pallas_bytes=256 * 1024):
    """Pallas implementation of DiscreteGate.forward.

    x:      (..., F) float activations
    weight: (F,)     gate pre-activation parameter
    mask:   (F,)     frozen binary-ish mask
    """
    assert mask_type in ("tanh", "sigmoid")
    orig_shape = x.shape
    F = orig_shape[-1]
    assert weight.shape == (F,) and mask.shape == (F,)

    x2d = x.reshape(-1, F)
    B = x2d.shape[0]
    itemsize = jnp.dtype(x.dtype).itemsize

    # ---- tiny-input short-circuit: XLA's fused elementwise op beats a
    # pallas_call launch + one grid step at these sizes ----
    if B * F * itemsize < min_pallas_bytes:
        coeff = (mask.astype(jnp.float32)
                 * _gate(weight.astype(jnp.float32), mask_type)).astype(x.dtype)
        return (coeff * x2d).reshape(orig_shape)

    # ---- canonicalize to a lane-dense slab WITHOUT any wrapper pad/slice
    # (each of those is an extra full HBM pass on a bandwidth-bound op) ----
    if F % _LANE == 0:
        # Already lane-dense.
        rows, L = B, F
        x_slab = x2d
        w_slab, m_slab = weight.reshape(1, F), mask.reshape(1, F)
        unpack = lambda y: y
    elif _LANE % F == 0 and B % (_LANE // F) == 0:
        # Fold rep batch rows into the 128-wide lane axis.  Row-major reshape
        # of a contiguous array is free; no padding, no output slice.
        rep = _LANE // F
        rows, L = B // rep, _LANE
        x_slab = x2d.reshape(rows, L)
        w_slab = jnp.tile(weight, rep).reshape(1, L)
        m_slab = jnp.tile(mask, rep).reshape(1, L)
        unpack = lambda y: y.reshape(B, F)
    else:
        # General case (including a batch tail that would need padding to
        # fold): keep the natural (B, F) layout.  A full-extent last dim is a
        # legal block shape; Mosaic masks the lane tail in-kernel, which is
        # far cheaper than jnp.pad + slice (those would double HBM traffic).
        rows, L = B, F
        x_slab = x2d
        w_slab, m_slab = weight.reshape(1, F), mask.reshape(1, F)
        unpack = lambda y: y

    # ---- row-tile sizing: ~4 MiB x-tiles amortize the ~0.35 us/step grid
    # overhead; sized against device VMEM so 2 buffers x (in + out) fit ----
    try:
        vmem_cap = int(pltpu.get_tpu_info().vmem_capacity_bytes)
    except Exception:  # pragma: no cover - conservative fallback (v7x per-TC)
        vmem_cap = 64 << 20
    tile_target = min(4 << 20, vmem_cap // 8)

    # Sublane packing multiple: 8 rows (f32), 16 (bf16/f16), 32 (int8/fp8).
    row_mult = 8 * max(1, 4 // itemsize)

    tb = max(1, tile_target // (L * itemsize))
    if tb >= rows:
        tb = rows                                # full-extent block: always legal
    else:
        tb = max(row_mult, (tb // row_mult) * row_mult)
        tb = min(tb, rows)

    tile_bytes = tb * L * itemsize
    grid = (pl.cdiv(rows, tb),)

    # in + out, double-buffered, plus slack for the (1, L) coefficients.
    # Raising this above v5e's 16 MiB default scoped VMEM keeps big tiles
    # legal there; capped at the chip's physical VMEM (v7x: 64 MiB/TC).
    vmem_limit = int(min(vmem_cap, max(32 << 20, 4 * tile_bytes + (2 << 20))))

    cost = pl.CostEstimate(
        flops=2 * rows * L,
        transcendentals=L * grid[0],
        bytes_accessed=(2 * rows * L + 2 * L) * itemsize,
    )

    kernel = functools.partial(_discrete_gate_kernel, mask_type=mask_type)

    y = pl.pallas_call(
        kernel,
        out_shape=jax.ShapeDtypeStruct((rows, L), x.dtype),
        grid_spec=pl.GridSpec(
            grid=grid,
            in_specs=[
                pl.BlockSpec((1, L), lambda i: (0, 0)),    # weight (resident)
                pl.BlockSpec((1, L), lambda i: (0, 0)),    # mask   (resident)
                pl.BlockSpec((tb, L), lambda i: (i, 0)),   # input rows
            ],
            out_specs=pl.BlockSpec((tb, L), lambda i: (i, 0)),
        ),
        # Independent row blocks: lets v7x's two TensorCores split the stream
        # (no-op on single-TC v5e/v6e).  If profiling shows only one TC pulls
        # on v7x, switch this axis to pltpu.CORE_PARALLEL.
        compiler_params=pltpu.CompilerParams(
            dimension_semantics=("parallel",),
            vmem_limit_bytes=vmem_limit,
        ),
        cost_estimate=cost,
    )(w_slab, m_slab, x_slab)

    return unpack(y).reshape(orig_shape)


if __name__ == "__main__":
    key = jax.random.PRNGKey(0)
    k_x, k_w, k_x2, k_x3, k_x4 = jax.random.split(key, 5)

    out_features = 32        # hidden size implied by `out_features`
    const_ = 0.1             # init_='uniform' -> U(-const_, const_)

    x = jax.random.normal(k_x, (8, out_features), dtype=jnp.float32)
    weight = jax.random.uniform(
        k_w, (out_features,), dtype=jnp.float32, minval=-const_, maxval=const_)
    mask = jnp.ones((out_features,), dtype=jnp.float32)

    # 1) tanh gate, free lane-fold path (8 rows x 32 feat -> 2 x 128 lanes).
    out = discrete_gate_forward(x, weight, mask, mask_type="tanh",
                                min_pallas_bytes=0)
    out = jax.block_until_ready(out)
    ref = mask * jnp.tanh(weight) * x
    assert jnp.allclose(out, ref, atol=1e-5, rtol=1e-5)

    # 2) sigmoid gate, batch not divisible by the fold factor -> no-copy
    #    full-extent-feature path.
    x2 = jax.random.normal(k_x2, (10, out_features), dtype=jnp.float32)
    out2 = jax.block_until_ready(
        discrete_gate_forward(x2, weight, mask, mask_type="sigmoid",
                              min_pallas_bytes=0))
    ref2 = mask * jax.nn.sigmoid(weight) * x2
    assert jnp.allclose(out2, ref2, atol=1e-5, rtol=1e-5)

    # 3) general feature count (48: neither multiple nor divisor of 128) with
    #    leading batch dims and a non-trivial mask.
    F3 = 48
    w3 = jax.random.uniform(k_w, (F3,), dtype=jnp.float32,
                            minval=-const_, maxval=const_)
    m3 = jnp.ones((F3,), dtype=jnp.float32).at[::5].set(0.0)
    x3 = jax.random.normal(k_x3, (2, 6, F3), dtype=jnp.float32)
    out3 = jax.block_until_ready(
        discrete_gate_forward(x3, w3, m3, mask_type="tanh", min_pallas_bytes=0))
    ref3 = m3 * jnp.tanh(w3) * x3
    assert jnp.allclose(out3, ref3, atol=1e-5, rtol=1e-5)

    # 4) bf16 activations with f32 parameters, F % 128 == 0 direct path,
    #    above the default short-circuit threshold (kernel path by default).
    F4 = 128
    w4 = jax.random.uniform(k_w, (F4,), dtype=jnp.float32,
                            minval=-const_, maxval=const_)
    m4 = jnp.ones((F4,), dtype=jnp.float32)
    x4 = jax.random.normal(k_x4, (2048, F4), dtype=jnp.float32).astype(jnp.bfloat16)
    out4 = jax.block_until_ready(
        discrete_gate_forward(x4, w4, m4, mask_type="sigmoid"))
    ref4 = ((m4 * jax.nn.sigmoid(w4)).astype(jnp.bfloat16) * x4).astype(jnp.float32)
    assert jnp.allclose(out4.astype(jnp.float32), ref4, atol=2e-2, rtol=2e-2)

    # 5) tiny input via the default short-circuit path (plain fused JAX).
    out5 = jax.block_until_ready(
        discrete_gate_forward(x, weight, mask, mask_type="tanh"))
    assert jnp.allclose(out5, ref, atol=1e-5, rtol=1e-5)

    # TODO(synk): update() / get_loss() / reset_parameters() are host-side
    # training utilities, not part of the forward pass; not kernelized.
    print("KERNEL_OK")
</pallas_src>

<mosaic_0001>
module attributes {stable_mosaic.version = 11 : i64} {
  func.func @_discrete_gate_kernel(%arg0: i32, %arg1: memref<1x128xf32, #tpu.memory_space<vmem>>, %arg2: memref<1x128xf32, #tpu.memory_space<vmem>>, %arg3: memref<2x128xf32, #tpu.memory_space<vmem>>, %arg4: memref<2x128xf32, #tpu.memory_space<vmem>>) attributes {dimension_semantics = [#tpu.dimension_semantics<parallel>], iteration_bounds = array<i64: 1>, scalar_prefetch = 0 : i64, scratch_operands = 0 : i64, tpu.core_type = #tpu.core_type<tc>, window_params = [{pipeline_mode = #tpu.pipeline_mode<synchronous>, transform_indices = @transform_0, window_bounds = array<i64: 1, 128>}, {pipeline_mode = #tpu.pipeline_mode<synchronous>, transform_indices = @transform_1, window_bounds = array<i64: 1, 128>}, {transform_indices = @transform_2, window_bounds = array<i64: 2, 128>}, {transform_indices = @transform_3, window_bounds = array<i64: 2, 128>}]} {
    %c0 = arith.constant 0 : index
    %c0_0 = arith.constant 0 : index
    %0 = vector.load %arg1[%c0, %c0_0] : memref<1x128xf32, #tpu.memory_space<vmem>>, vector<1x128xf32>
    %1 = math.tanh %0 : vector<1x128xf32>
    %c0_1 = arith.constant 0 : index
    %c0_2 = arith.constant 0 : index
    %2 = vector.load %arg2[%c0_1, %c0_2] : memref<1x128xf32, #tpu.memory_space<vmem>>, vector<1x128xf32>
    %3 = arith.mulf %2, %1 : vector<1x128xf32>
    %c0_3 = arith.constant 0 : index
    %c0_4 = arith.constant 0 : index
    %4 = vector.load %arg3[%c0_3, %c0_4] : memref<2x128xf32, #tpu.memory_space<vmem>>, vector<2x128xf32>
    %5 = vector.broadcast %3 : vector<1x128xf32> to vector<2x128xf32>
    %6 = arith.mulf %5, %4 : vector<2x128xf32>
    %c0_5 = arith.constant 0 : index
    %c0_6 = arith.constant 0 : index
    %7 = vector.load %arg4[%c0_5, %c0_6] : memref<2x128xf32, #tpu.memory_space<vmem>>, vector<2x128xf32>
    tpu.vector_store %arg4[%c0_5, %c0_6], %6 {strides = array<i32>} : memref<2x128xf32, #tpu.memory_space<vmem>>, vector<2x128xf32>,
    return
  }
  func.func @transform_0(%arg0: i32) -> (i32, i32) {
    %c0_i32 = arith.constant 0 : i32
    %c0_i32_0 = arith.constant 0 : i32
    %c0_i32_1 = arith.constant 0 : i32
    return %c0_i32, %c0_i32_0 : i32, i32
  }
  func.func @transform_1(%arg0: i32) -> (i32, i32) {
    %c0_i32 = arith.constant 0 : i32
    %c0_i32_0 = arith.constant 0 : i32
    %c0_i32_1 = arith.constant 0 : i32
    return %c0_i32, %c0_i32_0 : i32, i32
  }
  func.func @transform_2(%arg0: i32) -> (i32, i32) {
    %c0_i32 = arith.constant 0 : i32
    %c0_i32_0 = arith.constant 0 : i32
    return %arg0, %c0_i32 : i32, i32
  }
  func.func @transform_3(%arg0: i32) -> (i32, i32) {
    %c0_i32 = arith.constant 0 : i32
    %c0_i32_0 = arith.constant 0 : i32
    return %arg0, %c0_i32 : i32, i32
  }
}

</mosaic_0001>

<llo_original>
// kernel: tpu_custom_call.1
$region0: #{tpu_custom_call.1}
  #allocation0 [shape = 'u32[]', space=smem, size = 0x4, offset = 0x4, fixed_abs, tag = 'smem constant byte address 0x4 - core index']
  #allocation1 [shape = 'u32[72,128]{1,0:T(1,128)}', space=vmem, size = 0x9000, scoped, tag = 'internal scratch']
  %s0 = inlined_call_operand.hbm [shape: f32[1,128], index: 0, kind: input, shape index: {}]
  %s1 = inlined_call_operand.hbm [shape: f32[1,128], index: 1, kind: input, shape index: {}]
  %s2 = inlined_call_operand.hbm [shape: f32[2,128], index: 2, kind: input, shape index: {}]
  %s3 = inlined_call_operand.hbm [shape: f32[2,128], index: 3, kind: output, shape index: {}]
  %s4 = sld [smem:[#allocation0]]
  $region34: #{tpu_custom_call.1} parent=0
    _
  %s6 = ssub.s32 1, %s4
  %s7 = scalar_select 0, %s6, %s4
  $region1: #{tpu_custom_call.1} parent=0
    #allocation2 [shape = 'u8[512]{0}', space=vmem, size = 0x400, scoped, tag = 'input window, operand 0, single buffered']
    #allocation3 [shape = 's32[1]{0}', space=sflag, size = 0x4, scoped, tag = 'scoped memory for tpu_custom_call.1']
    #allocation4 [shape = 's32[1]{0}', space=sflag, size = 0x4, scoped, tag = 'scoped memory for tpu_custom_call.1']
    #allocation5 [shape = 'u8[512]{0}', space=vmem, size = 0x400, scoped, tag = 'input window, operand 1, single buffered']
    #allocation6 [shape = 's32[1]{0}', space=sflag, size = 0x4, scoped, tag = 'scoped memory for tpu_custom_call.1']
    #allocation7 [shape = 'u8[1024]{0}', space=vmem, size = 0x400, scoped, tag = 'input window, operand 2, single buffered']
    #allocation8 [shape = 'u8[1024]{0}', space=vmem, size = 0x400, scoped, tag = 'output window, operand 0, single buffered']
    %8 = vsyncpa [#allocation3], 0
    %9 = vsyncpa [#allocation6], 0
    %10 = vsyncpa [#allocation4], 0
    // Predicated region
    $region2: #{tpu_custom_call.1} parent=1 // pred_check
      _
    $region3: #{tpu_custom_call.1} parent=1 // pred_check_branch
      %12 = sbr.rel (0) target = $region5
    $region4: #{tpu_custom_call.1} parent=1 // pred_region
      %14 = vsyncadd [#allocation3], 0
      %s16 = sshll.u32 %s0, 4
      %s17 = int_to_ptr.hbm [resolvable:$true] %s16
      %s18 = sshll.u32 [#allocation2], 4
      %s19 = int_to_ptr.vmem [resolvable:$true] %s18
      %21 = dma.hbm_to_vmem [thread:$0]  %s17, 16, %s19, [#allocation3]
    $region5: #{tpu_custom_call.1} parent=1 // pred_fallthru
      _
    // Predicated region
    $region6: #{tpu_custom_call.1} parent=1 // pred_check
      _
    $region7: #{tpu_custom_call.1} parent=1 // pred_check_branch
      %23 = sbr.rel (0) target = $region9
    $region8: #{tpu_custom_call.1} parent=1 // pred_region
      %25 = vsyncadd [#allocation6], 0
      %s27 = sshll.u32 %s1, 4
      %s28 = int_to_ptr.hbm [resolvable:$true] %s27
      %s29 = sshll.u32 [#allocation5], 4
      %s30 = int_to_ptr.vmem [resolvable:$true] %s29
      %32 = dma.hbm_to_vmem [thread:$0]  %s28, 16, %s30, [#allocation6]
    $region9: #{tpu_custom_call.1} parent=1 // pred_fallthru
      _
    // Predicated region
    $region10: #{tpu_custom_call.1} parent=1 // pred_check
      _
    $region11: #{tpu_custom_call.1} parent=1 // pred_check_branch
      %34 = sbr.rel (0) target = $region13
    $region12: #{tpu_custom_call.1} parent=1 // pred_region
      %36 = vsyncadd [#allocation6], 0
      %s38 = sshll.u32 %s2, 4
      %s39 = int_to_ptr.hbm [resolvable:$true] %s38
      %s40 = sshll.u32 [#allocation7], 4
      %s41 = int_to_ptr.vmem [resolvable:$true] %s40
      %43 = dma.hbm_to_vmem [thread:$0]  %s39, 32, %s41, [#allocation6]
    $region13: #{tpu_custom_call.1} parent=1 // pred_fallthru
      _
    // Predicated region
    $region14: #{tpu_custom_call.1} parent=1 // pred_check
      _
    $region15: #{tpu_custom_call.1} parent=1 // pred_check_branch
      %45 = sbr.rel (0) target = $region17
    $region16: #{tpu_custom_call.1} parent=1 // pred_region
      %47 = dma.done [#allocation3], 16
    $region17: #{tpu_custom_call.1} parent=1 // pred_fallthru
      _
    // Predicated region
    $region18: #{tpu_custom_call.1} parent=1 // pred_check
      _
    $region19: #{tpu_custom_call.1} parent=1 // pred_check_branch
      %49 = sbr.rel (0) target = $region21
    $region20: #{tpu_custom_call.1} parent=1 // pred_region
      %51 = dma.done [#allocation6], 16
    $region21: #{tpu_custom_call.1} parent=1 // pred_fallthru
      _
    // Predicated region
    $region22: #{tpu_custom_call.1} parent=1 // pred_check
      _
    $region23: #{tpu_custom_call.1} parent=1 // pred_check_branch
      %53 = sbr.rel (0) target = $region25
    $region24: #{tpu_custom_call.1} parent=1 // pred_region
      %55 = dma.done [#allocation6], 32
    $region25: #{tpu_custom_call.1} parent=1 // pred_fallthru
      _
    %v56 = vld [vmem:[#allocation2] sm:$0x1]
    %v57 = vtanh.pop %v56
    %v58 = vld [vmem:[#allocation5] sm:$0x1]
    %v59 = vmul.f32 %v58, %v57
    %v60 = vld [vmem:[#allocation7] sm:$0x3]
    %v62 = vperm.slane %v59, 0
    %v64 = vmul.f32 %v62, %v60
    %65 = vst [vmem:[#allocation8] sm:$0x3] %v64
    // Predicated region
    $region26: #{tpu_custom_call.1} parent=1 // pred_check
      _
    $region27: #{tpu_custom_call.1} parent=1 // pred_check_branch
      %67 = sbr.rel (0) target = $region29
    $region28: #{tpu_custom_call.1} parent=1 // pred_region
      %69 = vsyncadd [#allocation4], 0
      %s71 = sshll.u32 [#allocation8], 4
      %s72 = int_to_ptr.vmem [resolvable:$true] %s71
      %s73 = sshll.u32 %s3, 4
      %s74 = int_to_ptr.hbm [resolvable:$true] %s73
      %76 = dma.vmem_to_hbm [thread:$0]  %s72, 32, %s74, [#allocation4]
    $region29: #{tpu_custom_call.1} parent=1 // pred_fallthru
      _
    // Predicated region
    $region30: #{tpu_custom_call.1} parent=1 // pred_check
      _
    $region31: #{tpu_custom_call.1} parent=1 // pred_check_branch
      %78 = sbr.rel (0) target = $region33
    $region32: #{tpu_custom_call.1} parent=1 // pred_region
      %80 = dma.done [#allocation4], 32
    $region33: #{tpu_custom_call.1} parent=1 // pred_fallthru
      _
    %81 = vsyncpa [#allocation3], 1
    %82 = vsyncpa [#allocation6], 1
    %83 = vsyncpa [#allocation4], 1

</llo_original>
